<compile_context>
chip_gen: v6e
topology: v6e:2x2x1
jax: 0.10.0
libtpu: 0.0.40
codegen_flags: <defaults>
</compile_context>

<pallas_src>
import functools

import jax
import jax.numpy as jnp
from jax.experimental import pallas as pl
from jax.experimental.pallas import tpu as pltpu


def _msp_kernel(x_ref, o_ref, *, step_len, num_orders, incremental):
    """Stats-pool of all orders for one (batch-tile, feature-tile) grid step.

    x_ref: (tB, t_block, tD)  input window (only the first t_max rows used)
    o_ref: (num_orders, tB, 2, tD)  output tile; [...,0,:]=mean, [...,1,:]=var
    """
    tB, _, tD = x_ref.shape

    if incremental:
        # All dyadic boundaries are sublane-aligned: each needed time row is
        # read exactly once via running prefix sums over dyadic segments.
        s1 = jnp.zeros((tB, tD), jnp.float32)
        s2 = jnp.zeros((tB, tD), jnp.float32)
        prev = 0
        for o in range(num_orders):
            length = (2 ** o) * step_len
            seg = x_ref[:, prev:length, :].astype(jnp.float32)
            s1 = s1 + jnp.sum(seg, axis=1)
            s2 = s2 + jnp.sum(seg * seg, axis=1)
            inv = jnp.float32(1.0 / length)
            mean = s1 * inv
            var = s2 * inv - mean * mean                    # E[x^2] - mean^2
            o_ref[o, :, 0, :] = mean.astype(o_ref.dtype)
            o_ref[o, :, 1, :] = var.astype(o_ref.dtype)
            prev = length
    else:
        # step_len is not a sublane multiple: slicing at unaligned offsets
        # would force per-segment sublane relayouts.  Instead sum each prefix
        # from row 0 (aligned start, masked tail).  Rows are re-read from
        # VMEM, not HBM — the kernel is HBM-bandwidth bound, so this is free.
        for o in range(num_orders):
            length = (2 ** o) * step_len
            seg = x_ref[:, 0:length, :].astype(jnp.float32)
            inv = jnp.float32(1.0 / length)
            mean = jnp.sum(seg, axis=1) * inv
            var = jnp.sum(seg * seg, axis=1) * inv - mean * mean
            o_ref[o, :, 0, :] = mean.astype(o_ref.dtype)
            o_ref[o, :, 1, :] = var.astype(o_ref.dtype)


def multi_scale_stats_pool1d(x, *, max_order, min_order, step_len, hidden_dim=256):
    """Pallas TPU MultiScaleStatsPool1d.forward.

    x: (B, T, D) float array.
    Returns: (num_orders, B, 2*D), num_orders = max_order - min_order + 1.
    """
    B, T, D = x.shape
    num_orders = max_order - min_order + 1
    assert num_orders >= 1
    t_max = (2 ** (num_orders - 1)) * step_len
    assert t_max <= T, "largest pooling window exceeds T"

    itemsize = jnp.dtype(x.dtype).itemsize
    # dtype-dependent sublane multiple: f32 -> 8, bf16 -> 16, int8/fp8 -> 32.
    sub = max(8, 32 // max(1, itemsize))

    # Only DMA the time rows the largest window actually needs.
    t_aligned = pl.cdiv(t_max, sub) * sub
    t_block = t_aligned if t_aligned <= T else T

    # Lane-dense feature tile (multiple of 128 when possible).
    if D <= 128:
        tD = D
    else:
        tD = min((D // 128) * 128, 512)

    # Batch tile from a VMEM budget for the double-buffered input window.
    # TODO(synk): if a single (1, t_block, tD) buffer exceeds the budget
    # (huge t_max), the time axis would need its own tiled accumulation pass.
    in_budget = 16 << 20                              # bytes for 2x input bufs
    per_row = 2 * t_block * tD * itemsize
    tB_cap = max(1, in_budget // per_row)
    if tB_cap >= 8:
        tB_cap = (tB_cap // 8) * 8
    tB = min(B, tB_cap)

    # Guarantee >= 2 grid steps so megacore (v7x, 2 TCs) has work for both.
    if pl.cdiv(B, tB) * pl.cdiv(D, tD) < 2 and B >= 2:
        tB = pl.cdiv(B, 2)

    grid = (pl.cdiv(B, tB), pl.cdiv(D, tD))

    kernel = functools.partial(
        _msp_kernel,
        step_len=step_len,
        num_orders=num_orders,
        incremental=(step_len % sub == 0),
    )

    # Internal output layout (num_orders, B, 2, D): the trailing (2, D) dims
    # merge to the PyTorch 2*D axis with a free contiguous reshape, and it
    # lets the feature axis be tiled while keeping [all means | all vars].
    out = pl.pallas_call(
        kernel,
        out_shape=jax.ShapeDtypeStruct((num_orders, B, 2, D), x.dtype),
        grid_spec=pltpu.PrefetchScalarGridSpec(
            num_scalar_prefetch=0,
            grid=grid,
            in_specs=[
                pl.BlockSpec((tB, t_block, tD), lambda b, d: (b, 0, d)),
            ],
            out_specs=pl.BlockSpec(
                (num_orders, tB, 2, tD), lambda b, d: (0, b, 0, d)
            ),
        ),
        compiler_params=pltpu.CompilerParams(
            dimension_semantics=("parallel", "parallel"),
            vmem_limit_bytes=48 * 1024 * 1024,   # safe on v7x's 64 MiB, above v5e/v6e defaults
        ),
    )(x)

    # Free (contiguous) merge of the trailing dims -> (num_orders, B, 2*D).
    return out.reshape(num_orders, B, 2 * D)


def _reference(x, *, max_order, min_order, step_len):
    """Pure-JAX reference mirroring the PyTorch forward."""
    x_sq = x ** 2
    outs = []
    for order in range(max_order - min_order + 1):
        length = 2 ** order * step_len
        mean = x[:, :length, :].mean(axis=1)
        var = x_sq[:, :length, :].mean(axis=1) - mean ** 2
        outs.append(jnp.concatenate([mean, var], axis=-1))
    return jnp.stack(outs, axis=0)


if __name__ == "__main__":
    key = jax.random.PRNGKey(0)
    k1, k2 = jax.random.split(key)

    # Config 1: unaligned step_len (prefix-from-zero path), windows [2, 4, 8].
    max_order, min_order, step_len = 3, 1, 2
    B, T, D = 2, 16, 16
    x = jax.random.normal(k1, (B, T, D), dtype=jnp.float32)
    out = multi_scale_stats_pool1d(
        x, max_order=max_order, min_order=min_order,
        step_len=step_len, hidden_dim=32,
    )
    out = jax.block_until_ready(out)
    ref = _reference(x, max_order=max_order, min_order=min_order, step_len=step_len)
    assert out.shape == ref.shape == (3, B, 2 * D)
    assert jnp.allclose(out, ref, atol=1e-5, rtol=1e-5), "mismatch (config 1)"

    # Config 2: sublane-aligned step_len (incremental dyadic-segment path),
    # with a partial trailing batch block.  Windows [8, 16, 32].
    max_order2, min_order2, step_len2 = 2, 0, 8
    B2, T2, D2 = 3, 40, 24
    x2 = jax.random.normal(k2, (B2, T2, D2), dtype=jnp.float32)
    out2 = multi_scale_stats_pool1d(
        x2, max_order=max_order2, min_order=min_order2,
        step_len=step_len2, hidden_dim=32,
    )
    out2 = jax.block_until_ready(out2)
    ref2 = _reference(x2, max_order=max_order2, min_order=min_order2, step_len=step_len2)
    assert out2.shape == ref2.shape == (3, B2, 2 * D2)
    assert jnp.allclose(out2, ref2, atol=1e-5, rtol=1e-5), "mismatch (config 2)"

    print("KERNEL_OK")
</pallas_src>

<mosaic_0001>
module attributes {stable_mosaic.version = 11 : i64} {
  func.func @_msp_kernel(%arg0: i32, %arg1: i32, %arg2: memref<1x8x16xf32, #tpu.memory_space<vmem>>, %arg3: memref<3x1x2x16xf32, #tpu.memory_space<vmem>>) attributes {dimension_semantics = [#tpu.dimension_semantics<parallel>, #tpu.dimension_semantics<parallel>], iteration_bounds = array<i64: 2, 1>, scalar_prefetch = 0 : i64, scratch_operands = 0 : i64, tpu.core_type = #tpu.core_type<tc>, window_params = [{transform_indices = @transform_0, window_bounds = array<i64: 1, 8, 16>}, {transform_indices = @transform_1, window_bounds = array<i64: 3, 1, 2, 16>}]} {
    %c0 = arith.constant 0 : index
    %c0_0 = arith.constant 0 : index
    %c0_1 = arith.constant 0 : index
    %0 = vector.load %arg2[%c0, %c0_0, %c0_1] : memref<1x8x16xf32, #tpu.memory_space<vmem>>, vector<1x2x16xf32>
    %cst = arith.constant dense<0.000000e+00> : vector<1x16xf32>
    %1 = vector.multi_reduction <add>, %0, %cst [1] : vector<1x2x16xf32> to vector<1x16xf32>
    %cst_2 = arith.constant 5.000000e-01 : f32
    %2 = vector.broadcast %cst_2 : f32 to vector<1x16xf32>
    %3 = arith.mulf %1, %2 : vector<1x16xf32>
    %4 = arith.mulf %0, %0 : vector<1x2x16xf32>
    %cst_3 = arith.constant dense<0.000000e+00> : vector<1x16xf32>
    %5 = vector.multi_reduction <add>, %4, %cst_3 [1] : vector<1x2x16xf32> to vector<1x16xf32>
    %cst_4 = arith.constant 5.000000e-01 : f32
    %6 = vector.broadcast %cst_4 : f32 to vector<1x16xf32>
    %7 = arith.mulf %5, %6 : vector<1x16xf32>
    %8 = arith.mulf %3, %3 : vector<1x16xf32>
    %9 = arith.subf %7, %8 : vector<1x16xf32>
    %c0_5 = arith.constant 0 : index
    %c0_6 = arith.constant 0 : index
    %c0_7 = arith.constant 0 : index
    %c0_8 = arith.constant 0 : index
    %10 = vector.load %arg3[%c0_5, %c0_6, %c0_7, %c0_8] : memref<3x1x2x16xf32, #tpu.memory_space<vmem>>, vector<1x1x1x16xf32>
    %11 = vector.shape_cast %10 : vector<1x1x1x16xf32> to vector<1x16xf32>
    %12 = vector.shape_cast %3 : vector<1x16xf32> to vector<1x1x1x16xf32>
    tpu.vector_store %arg3[%c0_5, %c0_6, %c0_7, %c0_8], %12 {strides = array<i32>} : memref<3x1x2x16xf32, #tpu.memory_space<vmem>>, vector<1x1x1x16xf32>,
    %c0_9 = arith.constant 0 : index
    %c0_10 = arith.constant 0 : index
    %c1 = arith.constant 1 : index
    %c0_11 = arith.constant 0 : index
    %13 = vector.load %arg3[%c0_9, %c0_10, %c1, %c0_11] : memref<3x1x2x16xf32, #tpu.memory_space<vmem>>, vector<1x1x1x16xf32>
    %14 = vector.shape_cast %13 : vector<1x1x1x16xf32> to vector<1x16xf32>
    %15 = vector.shape_cast %9 : vector<1x16xf32> to vector<1x1x1x16xf32>
    tpu.vector_store %arg3[%c0_9, %c0_10, %c1, %c0_11], %15 {strides = array<i32>} : memref<3x1x2x16xf32, #tpu.memory_space<vmem>>, vector<1x1x1x16xf32>,
    %c0_12 = arith.constant 0 : index
    %c0_13 = arith.constant 0 : index
    %c0_14 = arith.constant 0 : index
    %16 = vector.load %arg2[%c0_12, %c0_13, %c0_14] : memref<1x8x16xf32, #tpu.memory_space<vmem>>, vector<1x4x16xf32>
    %cst_15 = arith.constant dense<0.000000e+00> : vector<1x16xf32>
    %17 = vector.multi_reduction <add>, %16, %cst_15 [1] : vector<1x4x16xf32> to vector<1x16xf32>
    %cst_16 = arith.constant 2.500000e-01 : f32
    %18 = vector.broadcast %cst_16 : f32 to vector<1x16xf32>
    %19 = arith.mulf %17, %18 : vector<1x16xf32>
    %20 = arith.mulf %16, %16 : vector<1x4x16xf32>
    %cst_17 = arith.constant dense<0.000000e+00> : vector<1x16xf32>
    %21 = vector.multi_reduction <add>, %20, %cst_17 [1] : vector<1x4x16xf32> to vector<1x16xf32>
    %cst_18 = arith.constant 2.500000e-01 : f32
    %22 = vector.broadcast %cst_18 : f32 to vector<1x16xf32>
    %23 = arith.mulf %21, %22 : vector<1x16xf32>
    %24 = arith.mulf %19, %19 : vector<1x16xf32>
    %25 = arith.subf %23, %24 : vector<1x16xf32>
    %c1_19 = arith.constant 1 : index
    %c0_20 = arith.constant 0 : index
    %c0_21 = arith.constant 0 : index
    %c0_22 = arith.constant 0 : index
    %26 = vector.load %arg3[%c1_19, %c0_20, %c0_21, %c0_22] : memref<3x1x2x16xf32, #tpu.memory_space<vmem>>, vector<1x1x1x16xf32>
    %27 = vector.shape_cast %26 : vector<1x1x1x16xf32> to vector<1x16xf32>
    %28 = vector.shape_cast %19 : vector<1x16xf32> to vector<1x1x1x16xf32>
    tpu.vector_store %arg3[%c1_19, %c0_20, %c0_21, %c0_22], %28 {strides = array<i32>} : memref<3x1x2x16xf32, #tpu.memory_space<vmem>>, vector<1x1x1x16xf32>,
    %c1_23 = arith.constant 1 : index
    %c0_24 = arith.constant 0 : index
    %c1_25 = arith.constant 1 : index
    %c0_26 = arith.constant 0 : index
    %29 = vector.load %arg3[%c1_23, %c0_24, %c1_25, %c0_26] : memref<3x1x2x16xf32, #tpu.memory_space<vmem>>, vector<1x1x1x16xf32>
    %30 = vector.shape_cast %29 : vector<1x1x1x16xf32> to vector<1x16xf32>
    %31 = vector.shape_cast %25 : vector<1x16xf32> to vector<1x1x1x16xf32>
    tpu.vector_store %arg3[%c1_23, %c0_24, %c1_25, %c0_26], %31 {strides = array<i32>} : memref<3x1x2x16xf32, #tpu.memory_space<vmem>>, vector<1x1x1x16xf32>,
    %c0_27 = arith.constant 0 : index
    %c0_28 = arith.constant 0 : index
    %c0_29 = arith.constant 0 : index
    %32 = vector.load %arg2[%c0_27, %c0_28, %c0_29] : memref<1x8x16xf32, #tpu.memory_space<vmem>>, vector<1x8x16xf32>
    %cst_30 = arith.constant dense<0.000000e+00> : vector<1x16xf32>
    %33 = vector.multi_reduction <add>, %32, %cst_30 [1] : vector<1x8x16xf32> to vector<1x16xf32>
    %cst_31 = arith.constant 1.250000e-01 : f32
    %34 = vector.broadcast %cst_31 : f32 to vector<1x16xf32>
    %35 = arith.mulf %33, %34 : vector<1x16xf32>
    %36 = arith.mulf %32, %32 : vector<1x8x16xf32>
    %cst_32 = arith.constant dense<0.000000e+00> : vector<1x16xf32>
    %37 = vector.multi_reduction <add>, %36, %cst_32 [1] : vector<1x8x16xf32> to vector<1x16xf32>
    %cst_33 = arith.constant 1.250000e-01 : f32
    %38 = vector.broadcast %cst_33 : f32 to vector<1x16xf32>
    %39 = arith.mulf %37, %38 : vector<1x16xf32>
    %40 = arith.mulf %35, %35 : vector<1x16xf32>
    %41 = arith.subf %39, %40 : vector<1x16xf32>
    %c2 = arith.constant 2 : index
    %c0_34 = arith.constant 0 : index
    %c0_35 = arith.constant 0 : index
    %c0_36 = arith.constant 0 : index
    %42 = vector.load %arg3[%c2, %c0_34, %c0_35, %c0_36] : memref<3x1x2x16xf32, #tpu.memory_space<vmem>>, vector<1x1x1x16xf32>
    %43 = vector.shape_cast %42 : vector<1x1x1x16xf32> to vector<1x16xf32>
    %44 = vector.shape_cast %35 : vector<1x16xf32> to vector<1x1x1x16xf32>
    tpu.vector_store %arg3[%c2, %c0_34, %c0_35, %c0_36], %44 {strides = array<i32>} : memref<3x1x2x16xf32, #tpu.memory_space<vmem>>, vector<1x1x1x16xf32>,
    %c2_37 = arith.constant 2 : index
    %c0_38 = arith.constant 0 : index
    %c1_39 = arith.constant 1 : index
    %c0_40 = arith.constant 0 : index
    %45 = vector.load %arg3[%c2_37, %c0_38, %c1_39, %c0_40] : memref<3x1x2x16xf32, #tpu.memory_space<vmem>>, vector<1x1x1x16xf32>
    %46 = vector.shape_cast %45 : vector<1x1x1x16xf32> to vector<1x16xf32>
    %47 = vector.shape_cast %41 : vector<1x16xf32> to vector<1x1x1x16xf32>
    tpu.vector_store %arg3[%c2_37, %c0_38, %c1_39, %c0_40], %47 {strides = array<i32>} : memref<3x1x2x16xf32, #tpu.memory_space<vmem>>, vector<1x1x1x16xf32>,
    return
  }
  func.func @transform_0(%arg0: i32, %arg1: i32) -> (i32, i32, i32) {
    %c0_i32 = arith.constant 0 : i32
    %c0_i32_0 = arith.constant 0 : i32
    return %arg0, %c0_i32, %arg1 : i32, i32, i32
  }
  func.func @transform_1(%arg0: i32, %arg1: i32) -> (i32, i32, i32, i32) {
    %c0_i32 = arith.constant 0 : i32
    %c0_i32_0 = arith.constant 0 : i32
    %c0_i32_1 = arith.constant 0 : i32
    return %c0_i32, %arg0, %c0_i32_0, %arg1 : i32, i32, i32, i32
  }
}

</mosaic_0001>

<llo_original>
// kernel: tpu_custom_call.1
$region0: #{tpu_custom_call.1}
  #allocation0 [shape = 'u32[]', space=smem, size = 0x4, offset = 0x4, fixed_abs, tag = 'smem constant byte address 0x4 - core index']
  #allocation1 [shape = 'u32[144,128]{1,0:T(1,128)}', space=vmem, size = 0x12000, scoped, tag = 'internal scratch']
  %s0 = inlined_call_operand.hbm [shape: f32[2,16,16], index: 0, kind: input, shape index: {}]
  %s1 = inlined_call_operand.hbm [shape: f32[3,2,2,16], index: 1, kind: output, shape index: {}]
  %s2 = sld [smem:[#allocation0]]
  $region41: #{tpu_custom_call.1} parent=0
    _
  %s4 = ssub.s32 1, %s2
  %s5 = scalar_select 0, %s4, %s2
  $region1: #{tpu_custom_call.1} parent=0
    #allocation2 [shape = 'u8[8192]{0}', space=vmem, size = 0x2000, scoped, tag = 'input window, operand 0']
    #allocation3 [shape = 's32[2]{0}', space=sflag, size = 0x8, scoped, tag = 'scoped memory for tpu_custom_call.1']
    #allocation4 [shape = 's32[2]{0}', space=sflag, size = 0x8, scoped, tag = 'scoped memory for tpu_custom_call.1']
    #allocation5 [shape = 'u8[6144]{0}', space=vmem, size = 0x1800, scoped, tag = 'output window, operand 0']
    %6 = vsyncpa [#allocation3], 0
    %s7 = scalar_lea.sflag [#allocation3], 1
    %8 = vsyncpa %s7, 0
    %9 = vsyncpa [#allocation4], 0
    %s10 = scalar_lea.sflag [#allocation4], 1
    %11 = vsyncpa %s10, 0
    loop: start=0, step=1, limit=4
    $region2: #{tpu_custom_call.1} parent=1 // loop_pre_header
      _
    $region3: #{tpu_custom_call.1} parent=1 // loop_header
      %s13 = sphi 0, %s17
      %p14 = scmp.ge.s32.totalorder %s13, 4
      %s20 = sphi 0, %s32
      %s21 = sphi 0, %s28
      %s22 = sphi 0, %s20
      %s23 = sphi 0, %s21
      %s24 = sphi 0, %s22
      %s25 = sphi 0, %s23
      %s37 = sphi 0, %s39
      %s40 = sphi 0, %s37
      %s41 = sphi 0, %s40
      %s57 = sphi 0, %s41
      %s65 = sphi 0, %s67
      %s68 = sphi 0, %s65
      %s69 = sphi 0, %s68
      %s85 = sphi 0, %s69
    $region4: #{tpu_custom_call.1} parent=1 // loop_header_branch
      %16 = sbr.rel (%p14) target = $region8
    $region5: #{tpu_custom_call.1} parent=1 // loop_body
      %s18 = ssub.s32 %s13, 1
      %s19 = ssub.s32 %s13, 2
      %s26 = sadd.s32 1, %s21
      %p27 = scmp.ge.s32.totalorder %s26, 1
      %s28 = scalar_select %p27, 0, %s26
      %s29 = sadd.s32 1, %s20
      %s30 = scalar_select %p27, %s29, %s20
      %p31 = scmp.ge.s32.totalorder %s30, 2
      %s32 = scalar_select %p31, 0, %s30
      %s33 = ssub.s32 %s20, %s32
      %s34 = ssub.s32 %s21, %s28
      %s35 = sor.u32 %s33, %s34
      %p36 = scmp.eq.s32.totalorder %s35, 0
      %s38 = sadd.s32 %s37, 1
      %s39 = scalar_select %p36, %s37, %s38
      %p42 = pneg %p36
      %p43 = scmp.eq.s32.totalorder %s13, 1
      %p44 = por %p42, %p43
      %p45 = scmp.ne.s32.totalorder %s37, %s40
      %p46 = scmp.eq.s32.totalorder %s13, 0
      %p47 = por %p45, %p46
      %p48 = scmp.ne.s32.totalorder %s37, %s40
      %p49 = scmp.eq.s32.totalorder %s18, 1
      %p50 = por %p48, %p49
      %p51 = scmp.ne.s32.totalorder %s40, %s41
      %p52 = scmp.eq.s32.totalorder %s18, 0
      %p53 = por %p51, %p52
      %p54 = scmp.ne.s32.totalorder %s40, %s41
      %p55 = scmp.eq.s32.totalorder %s19, 1
      %p56 = por %p54, %p55
      %p58 = scmp.ne.s32.totalorder %s41, %s57
      %p59 = scmp.eq.s32.totalorder %s19, 0
      %p60 = por %p58, %p59
      %s61 = ssub.s32 %s20, %s32
      %s62 = ssub.s32 %s21, %s28
      %s63 = sor.u32 %s61, %s62
      %p64 = scmp.eq.s32.totalorder %s63, 0
      %s66 = sadd.s32 %s65, 1
      %s67 = scalar_select %p64, %s65, %s66
      %p70 = pneg %p64
      %p71 = scmp.eq.s32.totalorder %s13, 1
      %p72 = por %p70, %p71
      %p73 = scmp.ne.s32.totalorder %s65, %s68
      %p74 = scmp.eq.s32.totalorder %s13, 0
      %p75 = por %p73, %p74
      %p76 = scmp.ne.s32.totalorder %s65, %s68
      %p77 = scmp.eq.s32.totalorder %s18, 1
      %p78 = por %p76, %p77
      %p79 = scmp.ne.s32.totalorder %s68, %s69
      %p80 = scmp.eq.s32.totalorder %s18, 0
      %p81 = por %p79, %p80
      %p82 = scmp.ne.s32.totalorder %s68, %s69
      %p83 = scmp.eq.s32.totalorder %s19, 1
      %p84 = por %p82, %p83
      %p86 = scmp.ne.s32.totalorder %s69, %s85
      %p87 = scmp.eq.s32.totalorder %s19, 0
      %p88 = por %p86, %p87
      %p89 = scmp.le.s32.totalorder 1, %s13
      %p90 = scmp.lt.s32.totalorder %s13, 3
      %p91 = pnand %p89, %p90
      %p92 = pneg %p91
      // Predicated region
      $region9: #{tpu_custom_call.1} parent=5 // pred_check
        _
      $region10: #{tpu_custom_call.1} parent=5 // pred_check_branch
        %94 = sbr.rel (%p91) target = $region12
      $region11: #{tpu_custom_call.1} parent=5 // pred_region
        %s95 = ssub.s32 %s13, 1
      $region12: #{tpu_custom_call.1} parent=5 // pred_fallthru
        _
      %p96 = scmp.lt.s32.totalorder %s13, 2
      // Predicated region
      $region13: #{tpu_custom_call.1} parent=5 // pred_check
        %p97 = pneg %p96
      $region14: #{tpu_custom_call.1} parent=5 // pred_check_branch
        %99 = sbr.rel (%p97) target = $region16
      $region15: #{tpu_custom_call.1} parent=5 // pred_region
        // Predicated region
        $region17: #{tpu_custom_call.1} parent=15 // pred_check
          %p100 = pneg %p47
        $region18: #{tpu_custom_call.1} parent=15 // pred_check_branch
          %102 = sbr.rel (%p100) target = $region20
        $region19: #{tpu_custom_call.1} parent=15 // pred_region
          %s103 = sand.u32 %s37, 1
          %s104 = scalar_lea.sflag [#allocation3], %s103
          %s105 = sand.u32 %s37, 1
          %s106 = smul.addr %s105, 8
          %s107 = scalar_lea.vmem [#allocation2], %s106
          %s109 = ssub.s32 128, 128
          %110 = vsyncadd %s104, %s109
          %s111 = smul.addr %s20, 2
          %s112 = sadd.s32 %s21, %s111
          %s113 = smul.addr %s112, 128
          %s114 = scalar_lea.hbm %s0, %s113
          %s116 = sshll.u32 %s107, 4
          %s117 = int_to_ptr.vmem [resolvable:$true] %s116
          %119 = dma.hbm_to_vmem [thread:$0]  %s114, 128, %s117, %s104
        $region20: #{tpu_custom_call.1} parent=15 // pred_fallthru
          _
      $region16: #{tpu_custom_call.1} parent=5 // pred_fallthru
        _
      %p120 = scmp.le.s32.totalorder 1, %s13
      %p121 = scmp.lt.s32.totalorder %s13, 3
      %p122 = pnand %p120, %p121
      %p123 = pneg %p122
      // Predicated region
      $region21: #{tpu_custom_call.1} parent=5 // pred_check
        _
      $region22: #{tpu_custom_call.1} parent=5 // pred_check_branch
        %125 = sbr.rel (%p122) target = $region24
      $region23: #{tpu_custom_call.1} parent=5 // pred_region
        %s126 = ssub.s32 %s13, 1
        %s127 = sand.u32 %s40, 1
        %s128 = scalar_lea.sflag [#allocation3], %s127
        %s129 = sand.u32 %s40, 1
        %s130 = smul.addr %s129, 8
        %s131 = scalar_lea.vmem [#allocation2], %s130
        // Predicated region
        $region25: #{tpu_custom_call.1} parent=23 // pred_check
          %p132 = pneg %p53
        $region26: #{tpu_custom_call.1} parent=23 // pred_check_branch
          %134 = sbr.rel (%p132) target = $region28
        $region27: #{tpu_custom_call.1} parent=23 // pred_region
          %135 = dma.done %s128, 128
        $region28: #{tpu_custom_call.1} parent=23 // pred_fallthru
          _
        %s136 = sand.u32 %s40, 1
        %s137 = scalar_lea.sflag [#allocation3], %s136
        %s138 = sand.u32 %s40, 1
        %s139 = smul.addr %s138, 8
        %s140 = scalar_lea.vmem [#allocation2], %s139
        %p141 = pneg %p53
        %p142 = pneg %p50
        %p143 = pneg %p81
        %p144 = pneg %p78
        %s145 = sand.u32 %s68, 1
        %s146 = scalar_lea.sflag [#allocation4], %s145
        %s147 = sand.u32 %s68, 1
        %s148 = smul.addr %s147, 6
        %s149 = scalar_lea.vmem [#allocation5], %s148
        %v150 = vld [vmem:[%s131] sm:$0x3]
        %vm151 = vcmask 123904
        %v152 = vsel %vm151, %v150, 0.0
        %v153 = vrot.slane %v152, 4
        %v154 = vadd.f32 %v152, %v153
        %v155 = vrot.slane %v154, 2
        %v156 = vadd.f32 %v154, %v155
        %v157 = vrot.slane %v156, 1
        %v158 = vadd.f32 %v156, %v157
        %v159 = vmul.f32 %v158, 0.5
        %v160 = vmul.f32 %v150, %v150
        %v161 = vsel %vm151, %v160, 0.0
        %v162 = vrot.slane %v161, 4
        %v163 = vadd.f32 %v161, %v162
        %v164 = vrot.slane %v163, 2
        %v165 = vadd.f32 %v163, %v164
        %v166 = vrot.slane %v165, 1
        %v167 = vadd.f32 %v165, %v166
        %v168 = vmul.f32 %v167, 0.5
        %v169 = vmul.f32 %v159, %v159
        %v170 = vsub.f32 %v168, %v169
        %vm171 = vcmask 122880
        %172 = vst.msk [vmem:[%s149] sm:$0x1] %vm171, %v159
        %173 = vst.msk [vmem:[%s149 + $0x1] sm:$0x1] %vm171, %v170
        %v174 = vld [vmem:[%s131] sm:$0xf]
        %vm175 = vcmask 125952
        %v176 = vsel %vm175, %v174, 0.0
        %v177 = vrot.slane %v176, 4
        %v178 = vadd.f32 %v176, %v177
        %v179 = vrot.slane %v178, 2
        %v180 = vadd.f32 %v178, %v179
        %v181 = vrot.slane %v180, 1
        %v182 = vadd.f32 %v180, %v181
        %v183 = vmul.f32 %v182, 0.25
        %v184 = vmul.f32 %v174, %v174
        %v185 = vsel %vm175, %v184, 0.0
        %v186 = vrot.slane %v185, 4
        %v187 = vadd.f32 %v185, %v186
        %v188 = vrot.slane %v187, 2
        %v189 = vadd.f32 %v187, %v188
        %v190 = vrot.slane %v189, 1
        %v191 = vadd.f32 %v189, %v190
        %v192 = vmul.f32 %v191, 0.25
        %v193 = vmul.f32 %v183, %v183
        %v194 = vsub.f32 %v192, %v193
        %s195 = scalar_lea.vmem %s149, 2 [#allocation5]
        %196 = vst.msk [vmem:[%s195] sm:$0x1] %vm171, %v183
        %197 = vst.msk [vmem:[%s195 + $0x1] sm:$0x1] %vm171, %v194
        %v198 = vld [vmem:[%s131] sm:$0xff]
        %vm199 = vcmask 130048
        %v200 = vsel %vm199, %v198, 0.0
        %v201 = vrot.slane %v200, 4
        %v202 = vadd.f32 %v200, %v201
        %v203 = vrot.slane %v202, 2
        %v204 = vadd.f32 %v202, %v203
        %v205 = vrot.slane %v204, 1
        %v206 = vadd.f32 %v204, %v205
        %v207 = vmul.f32 %v206, 0.125
        %v208 = vmul.f32 %v198, %v198
        %v209 = vsel %vm199, %v208, 0.0
        %v210 = vrot.slane %v209, 4
        %v211 = vadd.f32 %v209, %v210
        %v212 = vrot.slane %v211, 2
        %v213 = vadd.f32 %v211, %v212
        %v214 = vrot.slane %v213, 1
        %v215 = vadd.f32 %v213, %v214
        %v216 = vmul.f32 %v215, 0.125
        %v217 = vmul.f32 %v207, %v207
        %v218 = vsub.f32 %v216, %v217
        %s219 = scalar_lea.vmem %s149, 4 [#allocation5]
        %220 = vst.msk [vmem:[%s219] sm:$0x1] %vm171, %v207
        %221 = vst.msk [vmem:[%s219 + $0x1] sm:$0x1] %vm171, %v218
        %s222 = sand.u32 %s68, 1
        %s223 = scalar_lea.sflag [#allocation4], %s222
        %s224 = sand.u32 %s68, 1
        %s225 = smul.addr %s224, 6
        %s226 = scalar_lea.vmem [#allocation5], %s225
        // Predicated region
        $region29: #{tpu_custom_call.1} parent=23 // pred_check
          %p227 = pneg %p78
        $region30: #{tpu_custom_call.1} parent=23 // pred_check_branch
          %229 = sbr.rel (%p227) target = $region32
        $region31: #{tpu_custom_call.1} parent=23 // pred_region
          %s231 = ssub.s32 96, 96
          %232 = vsyncadd %s223, %s231
          %s233 = sadd.s32 %s23, %s22
          %s234 = smul.addr %s233, 32
          %s235 = scalar_lea.hbm %s1, %s234
          %s236 = sshll.u32 %s226, 4
          %s237 = int_to_ptr.vmem [resolvable:$true] %s236
          %242 = dma.vmem_to_hbm [thread:$0]  %s237, 96, %s235, %s223, 32, 64, 2
        $region32: #{tpu_custom_call.1} parent=23 // pred_fallthru
          _
      $region24: #{tpu_custom_call.1} parent=5 // pred_fallthru
        _
      %p243 = scmp.le.s32.totalorder 2, %s13
      // Predicated region
      $region33: #{tpu_custom_call.1} parent=5 // pred_check
        %p244 = pneg %p243
      $region34: #{tpu_custom_call.1} parent=5 // pred_check_branch
        %246 = sbr.rel (%p244) target = $region36
      $region35: #{tpu_custom_call.1} parent=5 // pred_region
        %s247 = ssub.s32 %s13, 2
        // Predicated region
        $region37: #{tpu_custom_call.1} parent=35 // pred_check
          %p248 = pneg %p84
        $region38: #{tpu_custom_call.1} parent=35 // pred_check_branch
          %250 = sbr.rel (%p248) target = $region40
        $region39: #{tpu_custom_call.1} parent=35 // pred_region
          %s251 = sand.u32 %s69, 1
          %s252 = scalar_lea.sflag [#allocation4], %s251
          %s253 = sand.u32 %s69, 1
          %s254 = smul.addr %s253, 6
          %s255 = scalar_lea.vmem [#allocation5], %s254
          %256 = dma.done %s252, 96
        $region40: #{tpu_custom_call.1} parent=35 // pred_fallthru
          _
      $region36: #{tpu_custom_call.1} parent=5 // pred_fallthru
        _
    $region6: #{tpu_custom_call.1} parent=1 // loop_footer
      %s17 = sadd.s32 1, %s13
    $region7: #{tpu_custom_call.1} parent=1 // loop_footer_branch
      %12 = sbr.rel target = $region3
    $region8: #{tpu_custom_call.1} parent=1 // loop_exit
      _
    %257 = vsyncpa [#allocation3], 1
    %s258 = scalar_lea.sflag [#allocation3], 1
    %259 = vsyncpa %s258, 1
    %260 = vsyncpa [#allocation4], 1
    %s261 = scalar_lea.sflag [#allocation4], 1
    %262 = vsyncpa %s261, 1

</llo_original>
